<compile_context>
chip_gen: v6e
topology: v6e:2x2x1
jax: 0.10.0
libtpu: 0.0.40
codegen_flags: <defaults>
</compile_context>

<pallas_src>
import functools

import numpy as np
import jax
import jax.numpy as jnp
from jax.experimental import pallas as pl
from jax.experimental.pallas import tpu as pltpu

_RESNET_MEAN = (0.485, 0.456, 0.406)
_RESNET_STD = (0.229, 0.224, 0.225)

# ----------------------- small synthetic config -------------------------------
# (module defaults scaled down: embed_dim 1024->128, depth 24->2, heads 16->4,
#  patch 14->4, img 518->8; structure identical)
IMG_SIZE = 8
PATCH_SIZE = 4
EMBED_DIM = 128          # lane-dense last dim (= one vreg lane width)
DEPTH = 2
NUM_HEADS = 4
MLP_RATIO = 4.0
NUM_REGISTER_TOKENS = 4
AA_ORDER = ("frame", "global")
AA_BLOCK_SIZE = 1
ROPE_FREQ = 100.0
INIT_VALUES = 0.01

PATCH_START_IDX = 1 + NUM_REGISTER_TOKENS
HEAD_DIM = EMBED_DIM // NUM_HEADS
HIDDEN_DIM = int(EMBED_DIM * MLP_RATIO)
AA_BLOCK_NUM = DEPTH // AA_BLOCK_SIZE
LN_EPS = 1e-5            # nn.LayerNorm default
VMEM_LIMIT_BYTES = 32 * 1024 * 1024


def _const_spec(shape):
    """BlockSpec for a grid-invariant (constant index_map) operand.

    Single-buffered: the block never changes across grid steps, so the default
    double-buffering only wastes VMEM.
    """
    idx = lambda i, _shape=shape: tuple(0 for _ in _shape)
    try:
        return pl.BlockSpec(shape, idx, pipeline_mode=pl.Buffered(1))
    except (TypeError, AttributeError):   # older jax without pipeline_mode
        return pl.BlockSpec(shape, idx)


# ========================= Pallas kernels ======================================
def _patch_embed_kernel(x_ref, w_ref, b_ref, o_ref):
    # x_ref: (TM, K) bf16   w_ref: (K, C) bf16   b_ref: (1, C) f32   o_ref: (TM, C) f32
    o_ref[...] = (
        jnp.dot(x_ref[...], w_ref[...], preferred_element_type=jnp.float32)
        + b_ref[...]
    )


def patch_embed_pallas(patches, w, b):
    """Strided-conv patch embedding as one flattened matmul (bf16 operands)."""
    N, Pp, K = patches.shape
    C = w.shape[1]
    M = N * Pp
    # TODO(synk): bump TM to 256-512 at production M; tiny M keeps one tile.
    if M <= 256:
        TM = ((M + 7) // 8) * 8
        Mp = TM
    else:
        TM = 256
        Mp = ((M + TM - 1) // TM) * TM

    x = patches.reshape(M, K)
    x = jnp.pad(x, ((0, Mp - M), (0, 0))).astype(jnp.bfloat16)
    wb = w.astype(jnp.bfloat16)

    out = pl.pallas_call(
        _patch_embed_kernel,
        out_shape=jax.ShapeDtypeStruct((Mp, C), jnp.float32),
        grid=(Mp // TM,),
        in_specs=[
            pl.BlockSpec((TM, K), lambda i: (i, 0)),   # K = full dim (no 128 pad)
            _const_spec((K, C)),
            _const_spec((1, C)),
        ],
        out_specs=pl.BlockSpec((TM, C), lambda i: (i, 0)),
        compiler_params=pltpu.CompilerParams(
            dimension_semantics=("parallel",),
            vmem_limit_bytes=VMEM_LIMIT_BYTES),
    )(x, wb, b)
    return out[:M].reshape(N, Pp, C)


def _block_kernel(
    x_ref, cos_ref, sinm_ref, sinp_ref, hred_ref, hbc_ref,
    n1w_ref, n1b_ref, qkvw_ref, qkvb_ref,
    qnw_ref, qnb_ref, knw_ref, knb_ref,
    pw_ref, pb_ref, g1_ref,
    n2w_ref, n2b_ref, f1w_ref, f1b_ref, f2w_ref, f2b_ref, g2_ref,
    o_ref, *, num_heads, quarter,
):
    """One transformer Block (attention + MLP) on SB sequences per grid step."""
    SB, L, C = x_ref.shape
    dh = C // num_heads
    scale = float(dh) ** -0.5
    bf = jnp.bfloat16

    cos = cos_ref[...]        # (L, C)  per-head table tiled over heads
    sinm = sinm_ref[...]      # (L, C)  sin * (-1 on first quarter of each half)
    sinp = sinp_ref[...]      # (L, C)  sin * (+1 on second quarter of each half)
    hred = hred_ref[...]      # (C, H)  per-head mean reduce (1/dh blocks)
    hbc = hbc_ref[...]        # (H, C)  broadcast per-head stat back to lanes
    qkv_w = qkvw_ref[...]     # (C, 3C) bf16
    proj_w = pw_ref[...]      # (C, C)  bf16
    fc1_w = f1w_ref[...]      # (C, hid) bf16
    fc2_w = f2w_ref[...]      # (hid, C) bf16

    def layernorm(v, w, b):              # full-width LayerNorm (f32)
        mu = jnp.mean(v, axis=-1, keepdims=True)
        var = jnp.mean(jnp.square(v - mu), axis=-1, keepdims=True)
        return (v - mu) * jax.lax.rsqrt(var + LN_EPS) * w + b

    def head_layernorm(v, w, b):         # per-head LayerNorm via skinny matmuls
        mu = jnp.dot(jnp.dot(v, hred, preferred_element_type=jnp.float32),
                     hbc, preferred_element_type=jnp.float32)
        vc = v - mu
        var = jnp.dot(jnp.dot(vc * vc, hred, preferred_element_type=jnp.float32),
                      hbc, preferred_element_type=jnp.float32)
        return vc * jax.lax.rsqrt(var + LN_EPS) * w + b

    def apply_rope(t):                   # rotate-half via XLU rolls + signed sin
        rot = (pltpu.roll(t, C - quarter, axis=1) * sinm
               + pltpu.roll(t, quarter, axis=1) * sinp)
        return t * cos + rot

    for s in range(SB):                  # static unroll over sequences in block
        x = x_ref[s]                     # (L, C) f32

        # ---------------- attention branch ----------------
        h = layernorm(x, n1w_ref[0], n1b_ref[0])
        qkv = (jnp.dot(h.astype(bf), qkv_w, preferred_element_type=jnp.float32)
               + qkvb_ref[0])                                    # (L, 3C)
        q = apply_rope(head_layernorm(qkv[:, :C], qnw_ref[0], qnb_ref[0])) * scale
        k = apply_rope(head_layernorm(qkv[:, C:2 * C], knw_ref[0], knb_ref[0]))
        v = qkv[:, 2 * C:]
        qb, kb, vb = q.astype(bf), k.astype(bf), v.astype(bf)

        head_outs = []
        # TODO(synk): flash/KV-tiled attention needed at production L.
        for hd in range(num_heads):
            lo = hd * dh
            sc = jax.lax.dot_general(
                qb[:, lo:lo + dh], kb[:, lo:lo + dh],
                (((1,), (1,)), ((), ())),
                preferred_element_type=jnp.float32)              # (L, L)
            sc = sc - jnp.max(sc, axis=-1, keepdims=True)
            e = jnp.exp(sc)
            p = e * (1.0 / jnp.sum(e, axis=-1, keepdims=True))   # exact softmax
            head_outs.append(
                jnp.dot(p.astype(bf), vb[:, lo:lo + dh],
                        preferred_element_type=jnp.float32))     # (L, dh)
        attn = jnp.concatenate(head_outs, axis=-1)               # (L, C)
        attn = (jnp.dot(attn.astype(bf), proj_w,
                        preferred_element_type=jnp.float32) + pb_ref[0])
        x = x + g1_ref[0] * attn                                 # LayerScale + residual

        # ---------------- MLP branch ----------------
        h2 = layernorm(x, n2w_ref[0], n2b_ref[0])
        h2 = (jnp.dot(h2.astype(bf), fc1_w,
                      preferred_element_type=jnp.float32) + f1b_ref[0])
        h2 = 0.5 * h2 * (1.0 + jax.lax.erf(h2 * (2.0 ** -0.5)))  # exact GELU
        h2 = (jnp.dot(h2.astype(bf), fc2_w,
                      preferred_element_type=jnp.float32) + f2b_ref[0])
        x = x + g2_ref[0] * h2                                   # LayerScale + residual

        o_ref[s] = x


def _pick_seqs_per_step(n):
    """Largest divisor of n that still leaves >= 2 grid steps (megacore)."""
    if n <= 1:
        return 1
    for d in range(n // 2, 0, -1):
        if n % d == 0:
            return d
    return 1


def block_pallas(x, rope_tabs, head_mats, p, num_heads):
    N, L, C = x.shape
    hid = p["fc1_w"].shape[1]
    cos, sin_m, sin_p = rope_tabs
    hred, hbc = head_mats
    H = hred.shape[1]
    sb = _pick_seqs_per_step(N)
    quarter = (C // num_heads) // 4      # d_half // 2

    # per-head qk-norm affines tiled across heads to full C width
    qnw = jnp.tile(p["q_norm_w"], (1, num_heads))
    qnb = jnp.tile(p["q_norm_b"], (1, num_heads))
    knw = jnp.tile(p["k_norm_w"], (1, num_heads))
    knb = jnp.tile(p["k_norm_b"], (1, num_heads))

    bf = jnp.bfloat16
    in_specs = [
        pl.BlockSpec((sb, L, C), lambda i: (i, 0, 0)),   # x
        _const_spec((L, C)), _const_spec((L, C)), _const_spec((L, C)),  # rope tables
        _const_spec((C, H)), _const_spec((H, C)),        # per-head stat matrices
        _const_spec((1, C)), _const_spec((1, C)),        # norm1
        _const_spec((C, 3 * C)), _const_spec((1, 3 * C)),  # qkv
        _const_spec((1, C)), _const_spec((1, C)),        # q_norm (tiled)
        _const_spec((1, C)), _const_spec((1, C)),        # k_norm (tiled)
        _const_spec((C, C)), _const_spec((1, C)),        # proj
        _const_spec((1, C)),                             # ls1 gamma
        _const_spec((1, C)), _const_spec((1, C)),        # norm2
        _const_spec((C, hid)), _const_spec((1, hid)),    # fc1
        _const_spec((hid, C)), _const_spec((1, C)),      # fc2
        _const_spec((1, C)),                             # ls2 gamma
    ]
    args = (
        x, cos, sin_m, sin_p, hred, hbc,
        p["norm1_w"], p["norm1_b"], p["qkv_w"].astype(bf), p["qkv_b"],
        qnw, qnb, knw, knb,
        p["proj_w"].astype(bf), p["proj_b"], p["ls1_gamma"],
        p["norm2_w"], p["norm2_b"], p["fc1_w"].astype(bf), p["fc1_b"],
        p["fc2_w"].astype(bf), p["fc2_b"], p["ls2_gamma"],
    )
    return pl.pallas_call(
        functools.partial(_block_kernel, num_heads=num_heads, quarter=quarter),
        out_shape=jax.ShapeDtypeStruct((N, L, C), jnp.float32),
        grid=(N // sb,),
        in_specs=in_specs,
        out_specs=pl.BlockSpec((sb, L, C), lambda i: (i, 0, 0)),
        compiler_params=pltpu.CompilerParams(
            dimension_semantics=("parallel",),
            vmem_limit_bytes=VMEM_LIMIT_BYTES),
    )(*args)


# ========================= JAX glue (reshapes, params, RoPE tables) ===========
def slice_expand_and_flatten(token_tensor, B, S):
    # token_tensor: (1, 2, T, C)
    query = jnp.broadcast_to(token_tensor[:, 0:1], (B, 1) + token_tensor.shape[2:])
    others = jnp.broadcast_to(token_tensor[:, 1:], (B, S - 1) + token_tensor.shape[2:])
    combined = jnp.concatenate([query, others], axis=1)
    return combined.reshape((B * S,) + combined.shape[2:])


def patchify(x, ps):
    # x: (N, 3, H, W) -> (N, Hp*Wp, 3*ps*ps), patch vector ordered (c, ky, kx)
    N, C, H, W = x.shape
    x = x.reshape(N, C, H // ps, ps, W // ps, ps)
    x = jnp.transpose(x, (0, 2, 4, 1, 3, 5))
    return x.reshape(N, (H // ps) * (W // ps), C * ps * ps)


def position_grid(h, w):
    # torch.cartesian_prod(arange(h), arange(w)) -> (y, x) pairs row-major
    ys, xs = np.meshgrid(np.arange(h), np.arange(w), indexing="ij")
    return np.stack([ys.reshape(-1), xs.reshape(-1)], axis=-1).astype(np.float32)


def rope_tables(pos, head_dim, freq, num_heads):
    """cos / signed-sin tables, pre-tiled to full C width.

    RoPE2D: first half of head_dim rotated by y, second half by x.  rotate_half
    within each half is realized in-kernel by two lane rolls of +-quarter; the
    +-1 sign & quarter selection are folded into sin_m / sin_p here.
    """
    d_half = head_dim // 2
    q4 = d_half // 2
    exponents = np.arange(0, d_half, 2, dtype=np.float32) / np.float32(d_half)
    inv_freq = (1.0 / (freq ** exponents)).astype(np.float32)       # (q4,)
    pos = np.asarray(pos, np.float32)
    ang_y = pos[:, 0:1] * inv_freq                                   # (L, q4)
    ang_x = pos[:, 1:2] * inv_freq
    ang_y = np.concatenate([ang_y, ang_y], axis=-1)                  # (L, d_half)
    ang_x = np.concatenate([ang_x, ang_x], axis=-1)
    cos = np.concatenate([np.cos(ang_y), np.cos(ang_x)], axis=-1)    # (L, dh)
    sin = np.concatenate([np.sin(ang_y), np.sin(ang_x)], axis=-1)
    cos = np.tile(cos, (1, num_heads)).astype(np.float32)            # (L, C)
    sin = np.tile(sin, (1, num_heads)).astype(np.float32)
    C = head_dim * num_heads
    lane = np.arange(C)
    first_quarter = (lane % d_half) < q4
    sin_m = np.where(first_quarter, -sin, 0.0).astype(np.float32)    # pairs roll(+q4 src)
    sin_p = np.where(first_quarter, 0.0, sin).astype(np.float32)     # pairs roll(-q4 src)
    return (jnp.asarray(cos, jnp.float32),
            jnp.asarray(sin_m, jnp.float32),
            jnp.asarray(sin_p, jnp.float32))


def head_matrices(head_dim, num_heads):
    # skinny reduce (C,H) and broadcast (H,C) matrices for per-head LayerNorm stats
    hred = np.kron(np.eye(num_heads, dtype=np.float32),
                   np.full((head_dim, 1), 1.0 / head_dim, np.float32))
    hbc = np.kron(np.eye(num_heads, dtype=np.float32),
                  np.ones((1, head_dim), np.float32))
    return jnp.asarray(hred), jnp.asarray(hbc)


def init_block_params(key, C, hid, head_dim):
    ks = jax.random.split(key, 4)

    def lin(k, fi, fo):
        return jax.random.normal(k, (fi, fo), jnp.float32) * 0.02

    return {
        "norm1_w": jnp.ones((1, C), jnp.float32),
        "norm1_b": jnp.zeros((1, C), jnp.float32),
        "qkv_w": lin(ks[0], C, 3 * C),
        "qkv_b": jnp.zeros((1, 3 * C), jnp.float32),
        "q_norm_w": jnp.ones((1, head_dim), jnp.float32),
        "q_norm_b": jnp.zeros((1, head_dim), jnp.float32),
        "k_norm_w": jnp.ones((1, head_dim), jnp.float32),
        "k_norm_b": jnp.zeros((1, head_dim), jnp.float32),
        "proj_w": lin(ks[1], C, C),
        "proj_b": jnp.zeros((1, C), jnp.float32),
        "ls1_gamma": jnp.full((1, C), INIT_VALUES, jnp.float32),
        "norm2_w": jnp.ones((1, C), jnp.float32),
        "norm2_b": jnp.zeros((1, C), jnp.float32),
        "fc1_w": lin(ks[2], C, hid),
        "fc1_b": jnp.zeros((1, hid), jnp.float32),
        "fc2_w": lin(ks[3], hid, C),
        "fc2_b": jnp.zeros((1, C), jnp.float32),
        "ls2_gamma": jnp.full((1, C), INIT_VALUES, jnp.float32),
    }


def init_aggregator_params(key):
    K = 3 * PATCH_SIZE * PATCH_SIZE
    keys = jax.random.split(key, 4 + 2 * DEPTH)
    return {
        "patch_w": jax.random.normal(keys[0], (K, EMBED_DIM), jnp.float32) * 0.02,
        "patch_b": jnp.zeros((1, EMBED_DIM), jnp.float32),
        "camera_token": jax.random.normal(keys[1], (1, 2, 1, EMBED_DIM), jnp.float32)
        * 1e-6,
        "register_token": jax.random.normal(
            keys[2], (1, 2, NUM_REGISTER_TOKENS, EMBED_DIM), jnp.float32
        ) * 1e-6,
        "frame_blocks": [
            init_block_params(keys[4 + i], EMBED_DIM, HIDDEN_DIM, HEAD_DIM)
            for i in range(DEPTH)
        ],
        "global_blocks": [
            init_block_params(keys[4 + DEPTH + i], EMBED_DIM, HIDDEN_DIM, HEAD_DIM)
            for i in range(DEPTH)
        ],
    }


def aggregator_forward(params, images):
    B, S, C_in, H, W = images.shape
    assert C_in == 3, "Expected 3 input channels"
    ps = PATCH_SIZE
    C = EMBED_DIM

    # ResNet normalization (elementwise glue)
    mean = jnp.asarray(_RESNET_MEAN, jnp.float32).reshape(1, 1, 3, 1, 1)
    std = jnp.asarray(_RESNET_STD, jnp.float32).reshape(1, 1, 3, 1, 1)
    x = (images - mean) / std
    x = x.reshape(B * S, C_in, H, W)

    # patch embedding (Pallas matmul kernel, bf16 operands)
    patches = patchify(x, ps)                                   # (B*S, Pp, K)
    patch_tokens = patch_embed_pallas(patches, params["patch_w"], params["patch_b"])

    # special tokens
    camera = slice_expand_and_flatten(params["camera_token"], B, S)      # (B*S,1,C)
    register = slice_expand_and_flatten(params["register_token"], B, S)  # (B*S,R,C)
    tokens = jnp.concatenate([camera, register, patch_tokens], axis=1)   # (B*S,P,C)
    P = tokens.shape[1]

    # 2D positions: special tokens at (0,0), patch tokens at grid + 1.
    hg, wg = H // ps, W // ps
    grid = position_grid(hg, wg)                                # (hg*wg, 2)
    pos_frame = np.concatenate(
        [np.zeros((PATCH_START_IDX, 2), np.float32), grid + 1.0], axis=0)  # (P, 2)
    pos_global = np.tile(pos_frame, (S, 1))                     # (S*P, 2)

    head_mats = head_matrices(HEAD_DIM, NUM_HEADS)
    tabs_f = rope_tables(pos_frame, HEAD_DIM, ROPE_FREQ, NUM_HEADS)
    tabs_g = rope_tables(pos_global, HEAD_DIM, ROPE_FREQ, NUM_HEADS)

    output_list = []
    frame_idx, global_idx = 0, 0
    for _ in range(AA_BLOCK_NUM):
        frame_inter, global_inter = [], []
        for attn_type in AA_ORDER:
            if attn_type == "frame":
                t = tokens.reshape(B * S, P, C)
                for _ in range(AA_BLOCK_SIZE):
                    t = block_pallas(t, tabs_f, head_mats,
                                     params["frame_blocks"][frame_idx], NUM_HEADS)
                    frame_idx += 1
                    frame_inter.append(t.reshape(B, S, P, C))
                tokens = t
            else:  # global
                t = tokens.reshape(B, S * P, C)
                for _ in range(AA_BLOCK_SIZE):
                    t = block_pallas(t, tabs_g, head_mats,
                                     params["global_blocks"][global_idx], NUM_HEADS)
                    global_idx += 1
                    global_inter.append(t.reshape(B, S, P, C))
                tokens = t
        for i in range(len(frame_inter)):
            output_list.append(
                jnp.concatenate([frame_inter[i], global_inter[i]], axis=-1))
    return output_list, PATCH_START_IDX


# ========================= main ================================================
if __name__ == "__main__":
    key = jax.random.PRNGKey(0)
    pkey, ikey = jax.random.split(key)
    params = init_aggregator_params(pkey)

    B, S = 2, 3
    images = jax.random.uniform(ikey, (B, S, 3, IMG_SIZE, IMG_SIZE), jnp.float32)

    outputs, patch_start_idx = aggregator_forward(params, images)
    outputs = [jax.block_until_ready(o) for o in outputs]

    expected_P = 1 + NUM_REGISTER_TOKENS + (IMG_SIZE // PATCH_SIZE) ** 2
    assert patch_start_idx == PATCH_START_IDX
    assert len(outputs) == AA_BLOCK_NUM * AA_BLOCK_SIZE
    for o in outputs:
        assert o.shape == (B, S, expected_P, 2 * EMBED_DIM), o.shape
        assert bool(jnp.all(jnp.isfinite(o)))
    print("KERNEL_OK")
</pallas_src>

<mosaic_0001>
module attributes {stable_mosaic.version = 11 : i64} {
  func.func @_patch_embed_kernel(%arg0: i32, %arg1: memref<24x48xbf16, #tpu.memory_space<vmem>>, %arg2: memref<48x128xbf16, #tpu.memory_space<vmem>>, %arg3: memref<1x128xf32, #tpu.memory_space<vmem>>, %arg4: memref<24x128xf32, #tpu.memory_space<vmem>>) attributes {dimension_semantics = [#tpu.dimension_semantics<parallel>], iteration_bounds = array<i64: 1>, scalar_prefetch = 0 : i64, scratch_operands = 0 : i64, tpu.core_type = #tpu.core_type<tc>, window_params = [{transform_indices = @transform_0, window_bounds = array<i64: 24, 48>}, {pipeline_mode = #tpu.pipeline_mode<synchronous>, transform_indices = @transform_1, window_bounds = array<i64: 48, 128>}, {pipeline_mode = #tpu.pipeline_mode<synchronous>, transform_indices = @transform_2, window_bounds = array<i64: 1, 128>}, {transform_indices = @transform_3, window_bounds = array<i64: 24, 128>}]} {
    %c0 = arith.constant 0 : index
    %c0_0 = arith.constant 0 : index
    %0 = vector.load %arg1[%c0, %c0_0] : memref<24x48xbf16, #tpu.memory_space<vmem>>, vector<24x48xbf16>
    %c0_1 = arith.constant 0 : index
    %c0_2 = arith.constant 0 : index
    %1 = vector.load %arg2[%c0_1, %c0_2] : memref<48x128xbf16, #tpu.memory_space<vmem>>, vector<48x128xbf16>
    %cst = arith.constant dense<0.000000e+00> : vector<24x128xf32>
    %2 = tpu.matmul %0, %1, %cst {dimension_numbers = #tpu.dot_dimension_numbers<[1], [0], [0], [1], [0, 0, 1, 1], [], []>} : vector<24x48xbf16>, vector<48x128xbf16>, vector<24x128xf32> -> vector<24x128xf32>
    %c0_3 = arith.constant 0 : index
    %c0_4 = arith.constant 0 : index
    %3 = vector.load %arg3[%c0_3, %c0_4] : memref<1x128xf32, #tpu.memory_space<vmem>>, vector<1x128xf32>
    %4 = vector.broadcast %3 : vector<1x128xf32> to vector<24x128xf32>
    %5 = arith.addf %2, %4 : vector<24x128xf32>
    %c0_5 = arith.constant 0 : index
    %c0_6 = arith.constant 0 : index
    %6 = vector.load %arg4[%c0_5, %c0_6] : memref<24x128xf32, #tpu.memory_space<vmem>>, vector<24x128xf32>
    tpu.vector_store %arg4[%c0_5, %c0_6], %5 {strides = array<i32>} : memref<24x128xf32, #tpu.memory_space<vmem>>, vector<24x128xf32>,
    return
  }
  func.func @transform_0(%arg0: i32) -> (i32, i32) {
    %c0_i32 = arith.constant 0 : i32
    %c0_i32_0 = arith.constant 0 : i32
    return %arg0, %c0_i32 : i32, i32
  }
  func.func @transform_1(%arg0: i32) -> (i32, i32) {
    %c0_i32 = arith.constant 0 : i32
    %c0_i32_0 = arith.constant 0 : i32
    %c0_i32_1 = arith.constant 0 : i32
    return %c0_i32, %c0_i32_0 : i32, i32
  }
  func.func @transform_2(%arg0: i32) -> (i32, i32) {
    %c0_i32 = arith.constant 0 : i32
    %c0_i32_0 = arith.constant 0 : i32
    %c0_i32_1 = arith.constant 0 : i32
    return %c0_i32, %c0_i32_0 : i32, i32
  }
  func.func @transform_3(%arg0: i32) -> (i32, i32) {
    %c0_i32 = arith.constant 0 : i32
    %c0_i32_0 = arith.constant 0 : i32
    return %arg0, %c0_i32 : i32, i32
  }
}

</mosaic_0001>

<llo_original>
// kernel: tpu_custom_call.1
$region0: #{tpu_custom_call.1}
  #allocation0 [shape = 'u32[]', space=smem, size = 0x4, offset = 0x4, fixed_abs, tag = 'smem constant byte address 0x4 - core index']
  #allocation1 [shape = 'u32[144,128]{1,0:T(1,128)}', space=vmem, size = 0x12000, scoped, tag = 'internal scratch']
  %s0 = inlined_call_operand.hbm [shape: bf16[24,48], index: 0, kind: input, shape index: {}]
  %s1 = inlined_call_operand.hbm [shape: bf16[48,128], index: 1, kind: input, shape index: {}]
  %s2 = inlined_call_operand.vmem [shape: f32[1,128], index: 2, kind: input, shape index: {}]
  %s3 = inlined_call_operand.hbm [shape: f32[24,128], index: 3, kind: output, shape index: {}]
  %s4 = sld [smem:[#allocation0]]
  $region30: #{tpu_custom_call.1} parent=0
    _
  %s6 = ssub.s32 1, %s4
  %s7 = scalar_select 0, %s6, %s4
  $region1: #{tpu_custom_call.1} parent=0
    #allocation2 [shape = 'u8[6144]{0}', space=vmem, size = 0x1800, scoped, tag = 'input window, operand 0, single buffered']
    #allocation3 [shape = 's32[1]{0}', space=sflag, size = 0x4, scoped, tag = 'scoped memory for tpu_custom_call.1']
    #allocation4 [shape = 's32[1]{0}', space=sflag, size = 0x4, scoped, tag = 'scoped memory for tpu_custom_call.1']
    #allocation5 [shape = 'u8[12288]{0}', space=vmem, size = 0x3000, scoped, tag = 'input window, operand 1, single buffered']
    #allocation6 [shape = 's32[1]{0}', space=sflag, size = 0x4, scoped, tag = 'scoped memory for tpu_custom_call.1']
    #allocation7 [shape = 'u8[12288]{0}', space=vmem, size = 0x3000, scoped, tag = 'output window, operand 0, single buffered']
    %8 = vsyncpa [#allocation3], 0
    %9 = vsyncpa [#allocation6], 0
    %10 = vsyncpa [#allocation4], 0
    // Predicated region
    $region2: #{tpu_custom_call.1} parent=1 // pred_check
      _
    $region3: #{tpu_custom_call.1} parent=1 // pred_check_branch
      %12 = sbr.rel (0) target = $region5
    $region4: #{tpu_custom_call.1} parent=1 // pred_region
      %s14 = ssub.s32 192, 192
      %15 = vsyncadd [#allocation3], %s14
      %s16 = sshll.u32 [#allocation2], 4
      %s17 = int_to_ptr.vmem [resolvable:$true] %s16
      %22 = dma.hbm_to_vmem [thread:$0]  %s0, 192, %s17, [#allocation3], 64, 64, 4
    $region5: #{tpu_custom_call.1} parent=1 // pred_fallthru
      _
    // Predicated region
    $region6: #{tpu_custom_call.1} parent=1 // pred_check
      _
    $region7: #{tpu_custom_call.1} parent=1 // pred_check_branch
      %24 = sbr.rel (0) target = $region9
    $region8: #{tpu_custom_call.1} parent=1 // pred_region
      %s26 = ssub.s32 384, 384
      %27 = vsyncadd [#allocation6], %s26
      %s28 = sshll.u32 [#allocation5], 4
      %s29 = int_to_ptr.vmem [resolvable:$true] %s28
      %34 = dma.hbm_to_vmem [thread:$0]  %s1, 384, %s29, [#allocation6], 64, 64, 4
    $region9: #{tpu_custom_call.1} parent=1 // pred_fallthru
      _
    // Predicated region
    $region10: #{tpu_custom_call.1} parent=1 // pred_check
      _
    $region11: #{tpu_custom_call.1} parent=1 // pred_check_branch
      %36 = sbr.rel (0) target = $region13
    $region12: #{tpu_custom_call.1} parent=1 // pred_region
      _
    $region13: #{tpu_custom_call.1} parent=1 // pred_fallthru
      _
    // Predicated region
    $region14: #{tpu_custom_call.1} parent=1 // pred_check
      _
    $region15: #{tpu_custom_call.1} parent=1 // pred_check_branch
      %38 = sbr.rel (0) target = $region17
    $region16: #{tpu_custom_call.1} parent=1 // pred_region
      %39 = dma.done [#allocation3], 192
    $region17: #{tpu_custom_call.1} parent=1 // pred_fallthru
      _
    // Predicated region
    $region18: #{tpu_custom_call.1} parent=1 // pred_check
      _
    $region19: #{tpu_custom_call.1} parent=1 // pred_check_branch
      %41 = sbr.rel (0) target = $region21
    $region20: #{tpu_custom_call.1} parent=1 // pred_region
      %42 = dma.done [#allocation6], 384
    $region21: #{tpu_custom_call.1} parent=1 // pred_fallthru
      _
    %v44 = vld [vmem:[#allocation2] sm:$0xf]
    %v45 = vld [vmem:[#allocation2 + $0x4] sm:$0xf]
    %v46 = vld [vmem:[#allocation2 + $0x8] sm:$0xf]
    %v47 = vld [vmem:[#allocation5] sm:$0xf]
    %v48 = vld [vmem:[#allocation5 + $0x4] sm:$0xf]
    %v49 = vld [vmem:[#allocation5 + $0x8] sm:$0xf]
    %v50 = vld [vmem:[#allocation5 + $0xc] sm:$0xf]
    %v51 = vld [vmem:[#allocation5 + $0x10] sm:$0xf]
    %v52 = vld [vmem:[#allocation5 + $0x14] sm:$0xf]
    %v53 = vld [vmem:[%s2] sm:$0x1]
    %v55 = vlaneseq
    %v56 = vshrl.u32 %v55, 7
    %v57 = vsub.s32 0, %v56
    %v58 = vrot.slane %v53, %v57
    %v63 = vunpack.c.l.b16 %v44
    %v64 = vunpack.c.l.b16 %v45
    %v65 = vunpack.c.l.b16 %v46
    %v66 = vpack.c.b16 %v64, %v63
    %v67 = vpack.c.b16 %v65, %v65
    %v74 = vunpack.c.l.b16 %v47
    %v75 = vunpack.c.l.b16 %v48
    %v76 = vunpack.c.l.b16 %v49
    %v77 = vunpack.c.l.b16 %v50
    %v78 = vunpack.c.l.b16 %v51
    %v79 = vunpack.c.l.b16 %v52
    %v80 = vpack.c.b16 %v75, %v74
    %v81 = vpack.c.b16 %v77, %v76
    %v82 = vpack.c.b16 %v79, %v78
    %vm86 = vcmask 392192
    %v88 = vsel %vm86, %v66, 0
    %v91 = vsel %vm86, %v67, 0
    %93 = vmatprep.subr.bf16.mxu0 0
    %94 = vmatpush1.bf16.msra.mxu0 0
    %95 = vmatprep.subr.bf16.mxu0 0
    %96 = vmatpush1.bf16.msra.mxu0 0
    %97 = vmatprep.subr.bf16.mxu0 0
    %98 = vmatpush1.bf16.msra.mxu0 0
    %99 = vmatprep.subr.bf16.mxu0 0
    %100 = vmatpush1.bf16.msra.mxu0 0
    %101 = vmatprep.subr.bf16.mxu0 0
    %102 = vmatpush1.bf16.msra.mxu0 0
    %103 = vmatprep.subr.bf16.mxu0 0
    %104 = vmatpush1.bf16.msra.mxu0 %v82
    %105 = vmatprep.subr.bf16.mxu0 0
    %106 = vmatpush1.bf16.msra.mxu0 %v81
    %107 = vmatprep.subr.bf16.mxu0 0
    %108 = vmatpush1.bf16.msra.mxu0 %v80
    %109 = vmatprep.subr.bf16.mxu0 0
    %110 = vmatpush2.bf16.msra.mxu0 0
    %111 = vmatprep.subr.bf16.mxu0 0
    %112 = vmatpush2.bf16.msra.mxu0 0
    %113 = vmatprep.subr.bf16.mxu0 0
    %114 = vmatpush2.bf16.msra.mxu0 0
    %115 = vmatprep.subr.bf16.mxu0 0
    %116 = vmatpush2.bf16.msra.mxu0 0
    %117 = vmatprep.subr.bf16.mxu0 0
    %118 = vmatpush2.bf16.msra.mxu0 0
    %119 = vmatprep.subr.bf16.mxu0 0
    %120 = vmatpush2.bf16.msra.mxu0 0
    %121 = vmatprep.subr.bf16.mxu0 0
    %122 = vmatpush2.bf16.msra.mxu0 0
    %123 = vmatprep.subr.bf16.mxu0 0
    %124 = vmatpush2.bf16.msra.mxu0 0
    %125 = vmatprep.mubr.bf16.mxu0 0
    %126 = vmatmul.mubr.bf16.gmra.mxu0 %v88
    %v127 = vpop.f32.mrf.mxu0
    %v128 = vadd.f32 %v58, %v127
    %v129 = vpop.f32.mrf.mxu0
    %v130 = vpop.f32.mrf.mxu0
    %v131 = vadd.f32 %v58, %v130
    %v132 = vpop.f32.mrf.mxu0
    %133 = vmatprep.mubr.bf16.mxu0 0
    %134 = vmatmul.mubr.bf16.gmra.mxu0 %v91
    %v135 = vpop.f32.mrf.mxu0
    %v136 = vadd.f32 %v58, %v135
    %v137 = vpop.f32.mrf.mxu0
    %v138 = vpop.f32.mrf.mxu0
    %v139 = vpop.f32.mrf.mxu0
    %140 = vdwg.mxu0
    %141 = vst [vmem:[#allocation7] sm:$0xff] %v128
    %142 = vst [vmem:[#allocation7 + $0x8] sm:$0xff] %v131
    %143 = vst [vmem:[#allocation7 + $0x10] sm:$0xff] %v136
    // Predicated region
    $region22: #{tpu_custom_call.1} parent=1 // pred_check
      _
    $region23: #{tpu_custom_call.1} parent=1 // pred_check_branch
      %145 = sbr.rel (0) target = $region25
    $region24: #{tpu_custom_call.1} parent=1 // pred_region
      %s147 = ssub.s32 384, 384
      %148 = vsyncadd [#allocation4], %s147
      %s149 = sshll.u32 [#allocation7], 4
      %s150 = int_to_ptr.vmem [resolvable:$true] %s149
      %155 = dma.vmem_to_hbm [thread:$0]  %s150, 384, %s3, [#allocation4], 128, 128, 8
    $region25: #{tpu_custom_call.1} parent=1 // pred_fallthru
      _
    // Predicated region
    $region26: #{tpu_custom_call.1} parent=1 // pred_check
      _
    $region27: #{tpu_custom_call.1} parent=1 // pred_check_branch
      %157 = sbr.rel (0) target = $region29
    $region28: #{tpu_custom_call.1} parent=1 // pred_region
      %158 = dma.done [#allocation4], 384
    $region29: #{tpu_custom_call.1} parent=1 // pred_fallthru
      _
    %159 = vsyncpa [#allocation3], 1
    %160 = vsyncpa [#allocation6], 1
    %161 = vsyncpa [#allocation4], 1

</llo_original>
